<compile_context>
chip_gen: v7x
topology: tpu7x:2x2x1
jax: 0.10.0
libtpu: 0.0.40
codegen_flags: <defaults>
</compile_context>

<pallas_src>
import functools

import jax
import jax.numpy as jnp
from jax.experimental import pallas as pl
from jax.experimental.pallas import tpu as pltpu

_LANE = 128


def _packed_shape(n):
    """Lane-dense 2-D presentation of a length-n flat buffer."""
    if n % _LANE == 0:
        return (n // _LANE, _LANE)   # full 128-lane rows -> unmasked vst
    return (1, n)                    # small/ragged fallback (masked tail only)


def _edf_kernel(cc_hat_ref, ct_hat_ref, cc_b_ref, ct_b_ref,
                cc_out_ref, ct_out_ref, *, one_minus_rho, scale):
    # Two fused EMA lines; scalars are compile-time immediates (no SMEM operand).
    cc_out_ref[...] = one_minus_rho * cc_hat_ref[...] + scale * cc_b_ref[...]
    ct_out_ref[...] = one_minus_rho * ct_hat_ref[...] + scale * ct_b_ref[...]


@functools.lru_cache(maxsize=None)
def _build_update(one_minus_rho, scale, no_of_groups, latent_size):
    n = no_of_groups * latent_size
    pshape = _packed_shape(n)

    kernel = functools.partial(_edf_kernel,
                               one_minus_rho=one_minus_rho,
                               scale=scale)

    vmem = pl.BlockSpec(memory_space=pltpu.MemorySpace.VMEM)  # whole array, no grid
    call = pl.pallas_call(
        kernel,
        out_shape=(jax.ShapeDtypeStruct(pshape, jnp.float32),
                   jax.ShapeDtypeStruct(pshape, jnp.float32)),
        in_specs=[vmem, vmem, vmem, vmem],
        out_specs=(vmem, vmem),
        input_output_aliases={0: 0, 1: 1},   # update both state buffers in place
    )

    @functools.partial(jax.jit, donate_argnums=(0, 1))
    def update(cc_state, ct_state, cc_batch, ct_batch):
        cc_b = cc_batch.reshape(pshape).astype(jnp.float32)
        ct_b = ct_batch.reshape(pshape).astype(jnp.float32)
        cc_new, ct_new = call(cc_state, ct_state, cc_b, ct_b)
        # Hand back the (G, L) views from inside the jit so forward() does not
        # dispatch extra reshape ops afterwards.
        return (cc_new, ct_new,
                cc_new.reshape(no_of_groups, latent_size),
                ct_new.reshape(no_of_groups, latent_size))

    return update


class StochasticEDFModel:
    """JAX/Pallas port of stochasticEDFModel (state kept as lane-dense buffers)."""

    def __init__(self, no_of_groups, latent_size, N, batch_size):
        self.no_of_groups = no_of_groups
        self.latent_size = latent_size
        pshape = _packed_shape(no_of_groups * latent_size)
        self._cc_state = jnp.full(pshape, N / (batch_size * no_of_groups), jnp.float32)
        self._ct_state = jnp.full(pshape, N / batch_size, jnp.float32)

    @property
    def countClass_hat(self):
        return self._cc_state.reshape(self.no_of_groups, self.latent_size)

    @property
    def countTotal_hat(self):
        return self._ct_state.reshape(self.no_of_groups, self.latent_size)

    def forward(self, rho, countClass_batch, countTotal_batch, N, batch_size):
        # rho / N / batch_size are run-constant hyperparameters: bake them in.
        one_minus_rho = 1.0 - float(rho)
        scale = float(rho) * (float(N) / float(batch_size))
        update = _build_update(one_minus_rho, scale,
                               self.no_of_groups, self.latent_size)
        self._cc_state, self._ct_state, cc_hat, ct_hat = update(
            self._cc_state, self._ct_state, countClass_batch, countTotal_batch)
        return cc_hat, ct_hat


if __name__ == "__main__":
    no_of_groups = 4
    latent_size = 32
    N = 1000.0
    batch_size = 8.0
    rho = 0.1

    key = jax.random.PRNGKey(0)
    k1, k2, k3, k4 = jax.random.split(key, 4)
    cc_b1 = jax.random.uniform(k1, (no_of_groups, latent_size), dtype=jnp.float32)
    ct_b1 = jax.random.uniform(k2, (no_of_groups, latent_size), dtype=jnp.float32)
    cc_b2 = jax.random.uniform(k3, (no_of_groups, latent_size), dtype=jnp.float32)
    ct_b2 = jax.random.uniform(k4, (no_of_groups, latent_size), dtype=jnp.float32)

    model = StochasticEDFModel(no_of_groups, latent_size, N, batch_size)
    # Two forward steps to exercise the in-place (aliased/donated) EMA chain.
    model.forward(rho, cc_b1, ct_b1, N, batch_size)
    cc, ct = model.forward(rho, cc_b2, ct_b2, N, batch_size)
    jax.block_until_ready((cc, ct))

    # Plain-JAX reference (two EMA steps).
    scale = rho * (N / batch_size)
    cc_ref = jnp.full((no_of_groups, latent_size),
                      N / (batch_size * no_of_groups), jnp.float32)
    ct_ref = jnp.full((no_of_groups, latent_size), N / batch_size, jnp.float32)
    cc_ref = (1 - rho) * cc_ref + scale * cc_b1
    ct_ref = (1 - rho) * ct_ref + scale * ct_b1
    cc_ref = (1 - rho) * cc_ref + scale * cc_b2
    ct_ref = (1 - rho) * ct_ref + scale * ct_b2

    assert cc.shape == (no_of_groups, latent_size)
    assert ct.shape == (no_of_groups, latent_size)
    assert jnp.allclose(cc, cc_ref, rtol=1e-5, atol=1e-5)
    assert jnp.allclose(ct, ct_ref, rtol=1e-5, atol=1e-5)

    print("KERNEL_OK")
</pallas_src>

<mosaic_0001>
module attributes {stable_mosaic.version = 11 : i64} {
  func.func @_edf_kernel(%arg0: memref<1x128xf32, #tpu.memory_space<vmem>>, %arg1: memref<1x128xf32, #tpu.memory_space<vmem>>, %arg2: memref<1x128xf32, #tpu.memory_space<vmem>>, %arg3: memref<1x128xf32, #tpu.memory_space<vmem>>, %arg4: memref<1x128xf32, #tpu.memory_space<vmem>>, %arg5: memref<1x128xf32, #tpu.memory_space<vmem>>) attributes {dimension_semantics = [], scalar_prefetch = 0 : i64, scratch_operands = 0 : i64, tpu.core_type = #tpu.core_type<tc>} {
    %c0 = arith.constant 0 : index
    %c0_0 = arith.constant 0 : index
    %0 = vector.load %arg0[%c0, %c0_0] : memref<1x128xf32, #tpu.memory_space<vmem>>, vector<1x128xf32>
    %cst = arith.constant 0.899999976 : f32
    %1 = vector.broadcast %cst : f32 to vector<1x128xf32>
    %2 = arith.mulf %1, %0 : vector<1x128xf32>
    %c0_1 = arith.constant 0 : index
    %c0_2 = arith.constant 0 : index
    %3 = vector.load %arg2[%c0_1, %c0_2] : memref<1x128xf32, #tpu.memory_space<vmem>>, vector<1x128xf32>
    %cst_3 = arith.constant 1.250000e+01 : f32
    %4 = vector.broadcast %cst_3 : f32 to vector<1x128xf32>
    %5 = arith.mulf %4, %3 : vector<1x128xf32>
    %6 = arith.addf %2, %5 : vector<1x128xf32>
    %c0_4 = arith.constant 0 : index
    %c0_5 = arith.constant 0 : index
    %7 = vector.load %arg4[%c0_4, %c0_5] : memref<1x128xf32, #tpu.memory_space<vmem>>, vector<1x128xf32>
    tpu.vector_store %arg4[%c0_4, %c0_5], %6 {strides = array<i32>} : memref<1x128xf32, #tpu.memory_space<vmem>>, vector<1x128xf32>,
    %c0_6 = arith.constant 0 : index
    %c0_7 = arith.constant 0 : index
    %8 = vector.load %arg1[%c0_6, %c0_7] : memref<1x128xf32, #tpu.memory_space<vmem>>, vector<1x128xf32>
    %cst_8 = arith.constant 0.899999976 : f32
    %9 = vector.broadcast %cst_8 : f32 to vector<1x128xf32>
    %10 = arith.mulf %9, %8 : vector<1x128xf32>
    %c0_9 = arith.constant 0 : index
    %c0_10 = arith.constant 0 : index
    %11 = vector.load %arg3[%c0_9, %c0_10] : memref<1x128xf32, #tpu.memory_space<vmem>>, vector<1x128xf32>
    %cst_11 = arith.constant 1.250000e+01 : f32
    %12 = vector.broadcast %cst_11 : f32 to vector<1x128xf32>
    %13 = arith.mulf %12, %11 : vector<1x128xf32>
    %14 = arith.addf %10, %13 : vector<1x128xf32>
    %c0_12 = arith.constant 0 : index
    %c0_13 = arith.constant 0 : index
    %15 = vector.load %arg5[%c0_12, %c0_13] : memref<1x128xf32, #tpu.memory_space<vmem>>, vector<1x128xf32>
    tpu.vector_store %arg5[%c0_12, %c0_13], %14 {strides = array<i32>} : memref<1x128xf32, #tpu.memory_space<vmem>>, vector<1x128xf32>,
    return
  }
}

</mosaic_0001>

<llo_original>
// kernel: update.1
$region0: #{update.1}
  #allocation0 [shape = 'u32[]', space=smem, size = 0x4, offset = 0x4, fixed_abs, tag = 'smem constant byte address 0x4 - core index']
  #allocation1 [shape = 'u32[144,128]{1,0:T(1,128)}', space=vmem, size = 0x12000, scoped, tag = 'internal scratch']
  %s0 = inlined_call_operand.vmem [shape: f32[1,128], index: 0, kind: input, shape index: {}, may-alias: {0,4}]
  %s1 = inlined_call_operand.vmem [shape: f32[1,128], index: 1, kind: input, shape index: {}, may-alias: {1,5}]
  %s2 = inlined_call_operand.vmem [shape: f32[1,128], index: 2, kind: input, shape index: {}]
  %s3 = inlined_call_operand.vmem [shape: f32[1,128], index: 3, kind: input, shape index: {}]
  %s4 = inlined_call_operand.vmem [shape: f32[1,128], index: 4, kind: output, shape index: {0}, may-alias: {0,4}]
  %s5 = inlined_call_operand.vmem [shape: f32[1,128], index: 5, kind: output, shape index: {1}, may-alias: {1,5}]
  %6 = xla_tuple %s4, %s5
  %s7 = sld [smem:[#allocation0]]
  $region34: #{update.1} parent=0
    _
  %s9 = ssub.s32 1, %s7
  %s10 = scalar_select 0, %s9, %s7
  // Predicated region
  $region2: #{update.1} parent=0 // pred_check
    _
  $region3: #{update.1} parent=0 // pred_check_branch
    %12 = sbr.rel (0) target = $region5
  $region4: #{update.1} parent=0 // pred_region
    _
  $region5: #{update.1} parent=0 // pred_fallthru
    _
  // Predicated region
  $region6: #{update.1} parent=0 // pred_check
    _
  $region7: #{update.1} parent=0 // pred_check_branch
    %14 = sbr.rel (0) target = $region9
  $region8: #{update.1} parent=0 // pred_region
    _
  $region9: #{update.1} parent=0 // pred_fallthru
    _
  // Predicated region
  $region10: #{update.1} parent=0 // pred_check
    _
  $region11: #{update.1} parent=0 // pred_check_branch
    %16 = sbr.rel (0) target = $region13
  $region12: #{update.1} parent=0 // pred_region
    _
  $region13: #{update.1} parent=0 // pred_fallthru
    _
  // Predicated region
  $region14: #{update.1} parent=0 // pred_check
    _
  $region15: #{update.1} parent=0 // pred_check_branch
    %18 = sbr.rel (0) target = $region17
  $region16: #{update.1} parent=0 // pred_region
    _
  $region17: #{update.1} parent=0 // pred_fallthru
    _
  %v19 = vld [vmem:[%s0] sm:$0x1]
  %v20 = vmul.f32 %v19, 0.9
  %v21 = vld [vmem:[%s2] sm:$0x1]
  %v22 = vmul.f32 %v21, 12.5
  %v23 = vadd.f32 %v20, %v22
  %24 = vst [vmem:[%s4] sm:$0x1] %v23
  %v25 = vld [vmem:[%s1] sm:$0x1]
  %v26 = vmul.f32 %v25, 0.9
  %v27 = vld [vmem:[%s3] sm:$0x1]
  %v28 = vmul.f32 %v27, 12.5
  %v29 = vadd.f32 %v26, %v28
  %30 = vst [vmem:[%s5] sm:$0x1] %v29
  // Predicated region
  $region18: #{update.1} parent=0 // pred_check
    _
  $region19: #{update.1} parent=0 // pred_check_branch
    %32 = sbr.rel (0) target = $region21
  $region20: #{update.1} parent=0 // pred_region
    _
  $region21: #{update.1} parent=0 // pred_fallthru
    _
  // Predicated region
  $region22: #{update.1} parent=0 // pred_check
    _
  $region23: #{update.1} parent=0 // pred_check_branch
    %34 = sbr.rel (0) target = $region25
  $region24: #{update.1} parent=0 // pred_region
    _
  $region25: #{update.1} parent=0 // pred_fallthru
    _
  // Predicated region
  $region26: #{update.1} parent=0 // pred_check
    _
  $region27: #{update.1} parent=0 // pred_check_branch
    %36 = sbr.rel (0) target = $region29
  $region28: #{update.1} parent=0 // pred_region
    _
  $region29: #{update.1} parent=0 // pred_fallthru
    _
  // Predicated region
  $region30: #{update.1} parent=0 // pred_check
    _
  $region31: #{update.1} parent=0 // pred_check_branch
    %38 = sbr.rel (0) target = $region33
  $region32: #{update.1} parent=0 // pred_region
    _
  $region33: #{update.1} parent=0 // pred_fallthru
    _

</llo_original>
